<compile_context>
chip_gen: v6e
topology: v6e:2x2x1
jax: 0.10.0
libtpu: 0.0.40
codegen_flags: <defaults>
</compile_context>

<pallas_src>
import math
import functools

import jax
import jax.numpy as jnp
from jax import lax
from jax.experimental import pallas as pl
from jax.experimental.pallas import tpu as pltpu


def _round_up(x: int, m: int) -> int:
    return ((x + m - 1) // m) * m


def _gather_embed_kernel(idx_ref, emb_hbm, out_ref, rows_ref, sem, *, scale):
    """Row-gather embedding lookup fused with the sqrt(D) scale.

    idx_ref  : (n_pad,) int32  SMEM  scalar-prefetched flat token indices
    emb_hbm  : (V, D)          HBM   raw table ref (memory_space=pl.ANY)
    out_ref  : (TM, D)         VMEM  output tile for this grid step
    rows_ref : (TM, D)         VMEM  scratch receiving the gathered rows
    sem      : ()              DMA semaphore shared by all row copies
    """
    b = pl.program_id(0)
    tm = out_ref.shape[0]           # static Python int (block shape)
    base = b * tm

    # Issue all row DMAs for this token tile (destinations are static slices;
    # only the source row offset is dynamic, read from SMEM).
    for t in range(tm):
        row = idx_ref[base + t]
        pltpu.make_async_copy(
            emb_hbm.at[pl.ds(row, 1), :],
            rows_ref.at[pl.ds(t, 1), :],
            sem,
        ).start()

    # Wait for all of them (same-size copies sharing one semaphore).
    for t in range(tm):
        pltpu.make_async_copy(
            emb_hbm.at[pl.ds(0, 1), :],
            rows_ref.at[pl.ds(t, 1), :],
            sem,
        ).wait()

    out_ref[...] = (rows_ref[...] * jnp.float32(scale)).astype(out_ref.dtype)


@functools.partial(jax.jit, static_argnames=("tm",))
def input_embeddings(x, emb_table, *, tm=128):
    """x: integer indices of shape (...,); emb_table: (V, D) -> (..., D)."""
    V, D = emb_table.shape
    lead = x.shape
    n_tok = 1
    for s in lead:
        n_tok *= int(s)

    # Clamp indices so DMAs stay in bounds (PyTorch would error on OOB).
    idx = jnp.clip(x.reshape(-1).astype(jnp.int32), 0, V - 1)

    # Token tile: multiple of 8, no larger than needed for small inputs.
    tm_eff = min(tm, _round_up(n_tok, 8))
    n_pad = _round_up(n_tok, tm_eff)
    if n_pad != n_tok:
        idx = jnp.pad(idx, (0, n_pad - n_tok))   # padded slots gather row 0, dropped later
    nb = n_pad // tm_eff

    kernel = functools.partial(_gather_embed_kernel, scale=math.sqrt(D))

    out_flat = pl.pallas_call(
        kernel,
        out_shape=jax.ShapeDtypeStruct((n_pad, D), emb_table.dtype),
        grid_spec=pltpu.PrefetchScalarGridSpec(
            num_scalar_prefetch=1,                       # idx -> SMEM
            grid=(nb,),
            in_specs=[pl.BlockSpec(memory_space=pl.ANY)],  # table stays in HBM
            out_specs=pl.BlockSpec((tm_eff, D), lambda b, idx_ref: (b, 0)),
            scratch_shapes=[
                pltpu.VMEM((tm_eff, D), emb_table.dtype),  # gathered rows
                pltpu.SemaphoreType.DMA(()),               # shared DMA semaphore
            ],
        ),
        compiler_params=pltpu.CompilerParams(
            dimension_semantics=("parallel",)),            # megacore-friendly on v7x
    )(idx, emb_table)

    out = out_flat[:n_tok] if n_pad != n_tok else out_flat
    return out.reshape(*lead, D)


if __name__ == "__main__":
    # Small, deterministic setup consistent with the module:
    #   vocab_size=32, embedding_dim=128, batch=2, seq=8
    V, D = 32, 128
    B, S = 2, 8

    key = jax.random.PRNGKey(0)
    k_emb, k_idx = jax.random.split(key)

    # nn.Embedding default init: N(0, 1)
    emb_table = jax.random.normal(k_emb, (V, D), dtype=jnp.float32)
    x = jax.random.randint(k_idx, (B, S), 0, V, dtype=jnp.int32)

    ref = emb_table[x] * jnp.float32(math.sqrt(D))

    out = jax.block_until_ready(input_embeddings(x, emb_table))
    assert out.shape == (B, S, D)
    assert jnp.allclose(out, ref, atol=1e-5, rtol=1e-5)

    # Also exercise the multi-block grid path (nb > 1).
    out_multi = jax.block_until_ready(input_embeddings(x, emb_table, tm=8))
    assert jnp.allclose(out_multi, ref, atol=1e-5, rtol=1e-5)

    print("KERNEL_OK")
</pallas_src>

<mosaic_0001>
module attributes {stable_mosaic.version = 11 : i64} {
  func.func @_gather_embed_kernel(%arg0: i32, %arg1: memref<16xi32, #tpu.memory_space<smem>>, %arg2: memref<32x128xf32, #tpu.memory_space<any>>, %arg3: memref<16x128xf32, #tpu.memory_space<vmem>>, %arg4: memref<16x128xf32, #tpu.memory_space<vmem>>, %arg5: memref<!tpu.dma_semaphore, #tpu.memory_space<semaphore_mem>>) attributes {dimension_semantics = [#tpu.dimension_semantics<parallel>], iteration_bounds = array<i64: 1>, scalar_prefetch = 1 : i64, scratch_operands = 2 : i64, tpu.core_type = #tpu.core_type<tc>, window_params = [{}, {transform_indices = @transform_1, window_bounds = array<i64: 16, 128>}]} {
    %c16_i32 = arith.constant 16 : i32
    %0 = arith.muli %arg0, %c16_i32 : i32
    %c0_i32 = arith.constant 0 : i32
    %1 = arith.addi %0, %c0_i32 : i32
    %2 = arith.index_cast %1 : i32 to index
    %3 = memref.load %arg1[%2] : memref<16xi32, #tpu.memory_space<smem>>
    %c0_i32_0 = arith.constant 0 : i32
    %4 = tpu.memref_slice %arg2[%3, %c0_i32_0] : memref<32x128xf32, #tpu.memory_space<any>> -> memref<1x128xf32, #tpu.memory_space<any>>
    %c0_i32_1 = arith.constant 0 : i32
    %c0_i32_2 = arith.constant 0 : i32
    %5 = tpu.memref_slice %arg4[%c0_i32_1, %c0_i32_2] : memref<16x128xf32, #tpu.memory_space<vmem>> -> memref<1x128xf32, #tpu.memory_space<vmem>>
    tpu.enqueue_dma source(%4 : memref<1x128xf32, #tpu.memory_space<any>>) target(%5 : memref<1x128xf32, #tpu.memory_space<vmem>>) target_semaphore(%arg5 : memref<!tpu.dma_semaphore, #tpu.memory_space<semaphore_mem>>)
    %c1_i32 = arith.constant 1 : i32
    %6 = arith.addi %0, %c1_i32 : i32
    %7 = arith.index_cast %6 : i32 to index
    %8 = memref.load %arg1[%7] : memref<16xi32, #tpu.memory_space<smem>>
    %c0_i32_3 = arith.constant 0 : i32
    %9 = tpu.memref_slice %arg2[%8, %c0_i32_3] : memref<32x128xf32, #tpu.memory_space<any>> -> memref<1x128xf32, #tpu.memory_space<any>>
    %c1_i32_4 = arith.constant 1 : i32
    %c0_i32_5 = arith.constant 0 : i32
    %10 = tpu.memref_slice %arg4[%c1_i32_4, %c0_i32_5] : memref<16x128xf32, #tpu.memory_space<vmem>> -> memref<1x128xf32, #tpu.memory_space<vmem>>
    tpu.enqueue_dma source(%9 : memref<1x128xf32, #tpu.memory_space<any>>) target(%10 : memref<1x128xf32, #tpu.memory_space<vmem>>) target_semaphore(%arg5 : memref<!tpu.dma_semaphore, #tpu.memory_space<semaphore_mem>>)
    %c2_i32 = arith.constant 2 : i32
    %11 = arith.addi %0, %c2_i32 : i32
    %12 = arith.index_cast %11 : i32 to index
    %13 = memref.load %arg1[%12] : memref<16xi32, #tpu.memory_space<smem>>
    %c0_i32_6 = arith.constant 0 : i32
    %14 = tpu.memref_slice %arg2[%13, %c0_i32_6] : memref<32x128xf32, #tpu.memory_space<any>> -> memref<1x128xf32, #tpu.memory_space<any>>
    %c2_i32_7 = arith.constant 2 : i32
    %c0_i32_8 = arith.constant 0 : i32
    %15 = tpu.memref_slice %arg4[%c2_i32_7, %c0_i32_8] : memref<16x128xf32, #tpu.memory_space<vmem>> -> memref<1x128xf32, #tpu.memory_space<vmem>>
    tpu.enqueue_dma source(%14 : memref<1x128xf32, #tpu.memory_space<any>>) target(%15 : memref<1x128xf32, #tpu.memory_space<vmem>>) target_semaphore(%arg5 : memref<!tpu.dma_semaphore, #tpu.memory_space<semaphore_mem>>)
    %c3_i32 = arith.constant 3 : i32
    %16 = arith.addi %0, %c3_i32 : i32
    %17 = arith.index_cast %16 : i32 to index
    %18 = memref.load %arg1[%17] : memref<16xi32, #tpu.memory_space<smem>>
    %c0_i32_9 = arith.constant 0 : i32
    %19 = tpu.memref_slice %arg2[%18, %c0_i32_9] : memref<32x128xf32, #tpu.memory_space<any>> -> memref<1x128xf32, #tpu.memory_space<any>>
    %c3_i32_10 = arith.constant 3 : i32
    %c0_i32_11 = arith.constant 0 : i32
    %20 = tpu.memref_slice %arg4[%c3_i32_10, %c0_i32_11] : memref<16x128xf32, #tpu.memory_space<vmem>> -> memref<1x128xf32, #tpu.memory_space<vmem>>
    tpu.enqueue_dma source(%19 : memref<1x128xf32, #tpu.memory_space<any>>) target(%20 : memref<1x128xf32, #tpu.memory_space<vmem>>) target_semaphore(%arg5 : memref<!tpu.dma_semaphore, #tpu.memory_space<semaphore_mem>>)
    %c4_i32 = arith.constant 4 : i32
    %21 = arith.addi %0, %c4_i32 : i32
    %22 = arith.index_cast %21 : i32 to index
    %23 = memref.load %arg1[%22] : memref<16xi32, #tpu.memory_space<smem>>
    %c0_i32_12 = arith.constant 0 : i32
    %24 = tpu.memref_slice %arg2[%23, %c0_i32_12] : memref<32x128xf32, #tpu.memory_space<any>> -> memref<1x128xf32, #tpu.memory_space<any>>
    %c4_i32_13 = arith.constant 4 : i32
    %c0_i32_14 = arith.constant 0 : i32
    %25 = tpu.memref_slice %arg4[%c4_i32_13, %c0_i32_14] : memref<16x128xf32, #tpu.memory_space<vmem>> -> memref<1x128xf32, #tpu.memory_space<vmem>>
    tpu.enqueue_dma source(%24 : memref<1x128xf32, #tpu.memory_space<any>>) target(%25 : memref<1x128xf32, #tpu.memory_space<vmem>>) target_semaphore(%arg5 : memref<!tpu.dma_semaphore, #tpu.memory_space<semaphore_mem>>)
    %c5_i32 = arith.constant 5 : i32
    %26 = arith.addi %0, %c5_i32 : i32
    %27 = arith.index_cast %26 : i32 to index
    %28 = memref.load %arg1[%27] : memref<16xi32, #tpu.memory_space<smem>>
    %c0_i32_15 = arith.constant 0 : i32
    %29 = tpu.memref_slice %arg2[%28, %c0_i32_15] : memref<32x128xf32, #tpu.memory_space<any>> -> memref<1x128xf32, #tpu.memory_space<any>>
    %c5_i32_16 = arith.constant 5 : i32
    %c0_i32_17 = arith.constant 0 : i32
    %30 = tpu.memref_slice %arg4[%c5_i32_16, %c0_i32_17] : memref<16x128xf32, #tpu.memory_space<vmem>> -> memref<1x128xf32, #tpu.memory_space<vmem>>
    tpu.enqueue_dma source(%29 : memref<1x128xf32, #tpu.memory_space<any>>) target(%30 : memref<1x128xf32, #tpu.memory_space<vmem>>) target_semaphore(%arg5 : memref<!tpu.dma_semaphore, #tpu.memory_space<semaphore_mem>>)
    %c6_i32 = arith.constant 6 : i32
    %31 = arith.addi %0, %c6_i32 : i32
    %32 = arith.index_cast %31 : i32 to index
    %33 = memref.load %arg1[%32] : memref<16xi32, #tpu.memory_space<smem>>
    %c0_i32_18 = arith.constant 0 : i32
    %34 = tpu.memref_slice %arg2[%33, %c0_i32_18] : memref<32x128xf32, #tpu.memory_space<any>> -> memref<1x128xf32, #tpu.memory_space<any>>
    %c6_i32_19 = arith.constant 6 : i32
    %c0_i32_20 = arith.constant 0 : i32
    %35 = tpu.memref_slice %arg4[%c6_i32_19, %c0_i32_20] : memref<16x128xf32, #tpu.memory_space<vmem>> -> memref<1x128xf32, #tpu.memory_space<vmem>>
    tpu.enqueue_dma source(%34 : memref<1x128xf32, #tpu.memory_space<any>>) target(%35 : memref<1x128xf32, #tpu.memory_space<vmem>>) target_semaphore(%arg5 : memref<!tpu.dma_semaphore, #tpu.memory_space<semaphore_mem>>)
    %c7_i32 = arith.constant 7 : i32
    %36 = arith.addi %0, %c7_i32 : i32
    %37 = arith.index_cast %36 : i32 to index
    %38 = memref.load %arg1[%37] : memref<16xi32, #tpu.memory_space<smem>>
    %c0_i32_21 = arith.constant 0 : i32
    %39 = tpu.memref_slice %arg2[%38, %c0_i32_21] : memref<32x128xf32, #tpu.memory_space<any>> -> memref<1x128xf32, #tpu.memory_space<any>>
    %c7_i32_22 = arith.constant 7 : i32
    %c0_i32_23 = arith.constant 0 : i32
    %40 = tpu.memref_slice %arg4[%c7_i32_22, %c0_i32_23] : memref<16x128xf32, #tpu.memory_space<vmem>> -> memref<1x128xf32, #tpu.memory_space<vmem>>
    tpu.enqueue_dma source(%39 : memref<1x128xf32, #tpu.memory_space<any>>) target(%40 : memref<1x128xf32, #tpu.memory_space<vmem>>) target_semaphore(%arg5 : memref<!tpu.dma_semaphore, #tpu.memory_space<semaphore_mem>>)
    %c8_i32 = arith.constant 8 : i32
    %41 = arith.addi %0, %c8_i32 : i32
    %42 = arith.index_cast %41 : i32 to index
    %43 = memref.load %arg1[%42] : memref<16xi32, #tpu.memory_space<smem>>
    %c0_i32_24 = arith.constant 0 : i32
    %44 = tpu.memref_slice %arg2[%43, %c0_i32_24] : memref<32x128xf32, #tpu.memory_space<any>> -> memref<1x128xf32, #tpu.memory_space<any>>
    %c8_i32_25 = arith.constant 8 : i32
    %c0_i32_26 = arith.constant 0 : i32
    %45 = tpu.memref_slice %arg4[%c8_i32_25, %c0_i32_26] : memref<16x128xf32, #tpu.memory_space<vmem>> -> memref<1x128xf32, #tpu.memory_space<vmem>>
    tpu.enqueue_dma source(%44 : memref<1x128xf32, #tpu.memory_space<any>>) target(%45 : memref<1x128xf32, #tpu.memory_space<vmem>>) target_semaphore(%arg5 : memref<!tpu.dma_semaphore, #tpu.memory_space<semaphore_mem>>)
    %c9_i32 = arith.constant 9 : i32
    %46 = arith.addi %0, %c9_i32 : i32
    %47 = arith.index_cast %46 : i32 to index
    %48 = memref.load %arg1[%47] : memref<16xi32, #tpu.memory_space<smem>>
    %c0_i32_27 = arith.constant 0 : i32
    %49 = tpu.memref_slice %arg2[%48, %c0_i32_27] : memref<32x128xf32, #tpu.memory_space<any>> -> memref<1x128xf32, #tpu.memory_space<any>>
    %c9_i32_28 = arith.constant 9 : i32
    %c0_i32_29 = arith.constant 0 : i32
    %50 = tpu.memref_slice %arg4[%c9_i32_28, %c0_i32_29] : memref<16x128xf32, #tpu.memory_space<vmem>> -> memref<1x128xf32, #tpu.memory_space<vmem>>
    tpu.enqueue_dma source(%49 : memref<1x128xf32, #tpu.memory_space<any>>) target(%50 : memref<1x128xf32, #tpu.memory_space<vmem>>) target_semaphore(%arg5 : memref<!tpu.dma_semaphore, #tpu.memory_space<semaphore_mem>>)
    %c10_i32 = arith.constant 10 : i32
    %51 = arith.addi %0, %c10_i32 : i32
    %52 = arith.index_cast %51 : i32 to index
    %53 = memref.load %arg1[%52] : memref<16xi32, #tpu.memory_space<smem>>
    %c0_i32_30 = arith.constant 0 : i32
    %54 = tpu.memref_slice %arg2[%53, %c0_i32_30] : memref<32x128xf32, #tpu.memory_space<any>> -> memref<1x128xf32, #tpu.memory_space<any>>
    %c10_i32_31 = arith.constant 10 : i32
    %c0_i32_32 = arith.constant 0 : i32
    %55 = tpu.memref_slice %arg4[%c10_i32_31, %c0_i32_32] : memref<16x128xf32, #tpu.memory_space<vmem>> -> memref<1x128xf32, #tpu.memory_space<vmem>>
    tpu.enqueue_dma source(%54 : memref<1x128xf32, #tpu.memory_space<any>>) target(%55 : memref<1x128xf32, #tpu.memory_space<vmem>>) target_semaphore(%arg5 : memref<!tpu.dma_semaphore, #tpu.memory_space<semaphore_mem>>)
    %c11_i32 = arith.constant 11 : i32
    %56 = arith.addi %0, %c11_i32 : i32
    %57 = arith.index_cast %56 : i32 to index
    %58 = memref.load %arg1[%57] : memref<16xi32, #tpu.memory_space<smem>>
    %c0_i32_33 = arith.constant 0 : i32
    %59 = tpu.memref_slice %arg2[%58, %c0_i32_33] : memref<32x128xf32, #tpu.memory_space<any>> -> memref<1x128xf32, #tpu.memory_space<any>>
    %c11_i32_34 = arith.constant 11 : i32
    %c0_i32_35 = arith.constant 0 : i32
    %60 = tpu.memref_slice %arg4[%c11_i32_34, %c0_i32_35] : memref<16x128xf32, #tpu.memory_space<vmem>> -> memref<1x128xf32, #tpu.memory_space<vmem>>
    tpu.enqueue_dma source(%59 : memref<1x128xf32, #tpu.memory_space<any>>) target(%60 : memref<1x128xf32, #tpu.memory_space<vmem>>) target_semaphore(%arg5 : memref<!tpu.dma_semaphore, #tpu.memory_space<semaphore_mem>>)
    %c12_i32 = arith.constant 12 : i32
    %61 = arith.addi %0, %c12_i32 : i32
    %62 = arith.index_cast %61 : i32 to index
    %63 = memref.load %arg1[%62] : memref<16xi32, #tpu.memory_space<smem>>
    %c0_i32_36 = arith.constant 0 : i32
    %64 = tpu.memref_slice %arg2[%63, %c0_i32_36] : memref<32x128xf32, #tpu.memory_space<any>> -> memref<1x128xf32, #tpu.memory_space<any>>
    %c12_i32_37 = arith.constant 12 : i32
    %c0_i32_38 = arith.constant 0 : i32
    %65 = tpu.memref_slice %arg4[%c12_i32_37, %c0_i32_38] : memref<16x128xf32, #tpu.memory_space<vmem>> -> memref<1x128xf32, #tpu.memory_space<vmem>>
    tpu.enqueue_dma source(%64 : memref<1x128xf32, #tpu.memory_space<any>>) target(%65 : memref<1x128xf32, #tpu.memory_space<vmem>>) target_semaphore(%arg5 : memref<!tpu.dma_semaphore, #tpu.memory_space<semaphore_mem>>)
    %c13_i32 = arith.constant 13 : i32
    %66 = arith.addi %0, %c13_i32 : i32
    %67 = arith.index_cast %66 : i32 to index
    %68 = memref.load %arg1[%67] : memref<16xi32, #tpu.memory_space<smem>>
    %c0_i32_39 = arith.constant 0 : i32
    %69 = tpu.memref_slice %arg2[%68, %c0_i32_39] : memref<32x128xf32, #tpu.memory_space<any>> -> memref<1x128xf32, #tpu.memory_space<any>>
    %c13_i32_40 = arith.constant 13 : i32
    %c0_i32_41 = arith.constant 0 : i32
    %70 = tpu.memref_slice %arg4[%c13_i32_40, %c0_i32_41] : memref<16x128xf32, #tpu.memory_space<vmem>> -> memref<1x128xf32, #tpu.memory_space<vmem>>
    tpu.enqueue_dma source(%69 : memref<1x128xf32, #tpu.memory_space<any>>) target(%70 : memref<1x128xf32, #tpu.memory_space<vmem>>) target_semaphore(%arg5 : memref<!tpu.dma_semaphore, #tpu.memory_space<semaphore_mem>>)
    %c14_i32 = arith.constant 14 : i32
    %71 = arith.addi %0, %c14_i32 : i32
    %72 = arith.index_cast %71 : i32 to index
    %73 = memref.load %arg1[%72] : memref<16xi32, #tpu.memory_space<smem>>
    %c0_i32_42 = arith.constant 0 : i32
    %74 = tpu.memref_slice %arg2[%73, %c0_i32_42] : memref<32x128xf32, #tpu.memory_space<any>> -> memref<1x128xf32, #tpu.memory_space<any>>
    %c14_i32_43 = arith.constant 14 : i32
    %c0_i32_44 = arith.constant 0 : i32
    %75 = tpu.memref_slice %arg4[%c14_i32_43, %c0_i32_44] : memref<16x128xf32, #tpu.memory_space<vmem>> -> memref<1x128xf32, #tpu.memory_space<vmem>>
    tpu.enqueue_dma source(%74 : memref<1x128xf32, #tpu.memory_space<any>>) target(%75 : memref<1x128xf32, #tpu.memory_space<vmem>>) target_semaphore(%arg5 : memref<!tpu.dma_semaphore, #tpu.memory_space<semaphore_mem>>)
    %c15_i32 = arith.constant 15 : i32
    %76 = arith.addi %0, %c15_i32 : i32
    %77 = arith.index_cast %76 : i32 to index
    %78 = memref.load %arg1[%77] : memref<16xi32, #tpu.memory_space<smem>>
    %c0_i32_45 = arith.constant 0 : i32
    %79 = tpu.memref_slice %arg2[%78, %c0_i32_45] : memref<32x128xf32, #tpu.memory_space<any>> -> memref<1x128xf32, #tpu.memory_space<any>>
    %c15_i32_46 = arith.constant 15 : i32
    %c0_i32_47 = arith.constant 0 : i32
    %80 = tpu.memref_slice %arg4[%c15_i32_46, %c0_i32_47] : memref<16x128xf32, #tpu.memory_space<vmem>> -> memref<1x128xf32, #tpu.memory_space<vmem>>
    tpu.enqueue_dma source(%79 : memref<1x128xf32, #tpu.memory_space<any>>) target(%80 : memref<1x128xf32, #tpu.memory_space<vmem>>) target_semaphore(%arg5 : memref<!tpu.dma_semaphore, #tpu.memory_space<semaphore_mem>>)
    %c0_i32_48 = arith.constant 0 : i32
    %c0_i32_49 = arith.constant 0 : i32
    %81 = tpu.memref_slice %arg2[%c0_i32_48, %c0_i32_49] : memref<32x128xf32, #tpu.memory_space<any>> -> memref<1x128xf32, #tpu.memory_space<any>>
    %c0_i32_50 = arith.constant 0 : i32
    %c0_i32_51 = arith.constant 0 : i32
    %82 = tpu.memref_slice %arg4[%c0_i32_50, %c0_i32_51] : memref<16x128xf32, #tpu.memory_space<vmem>> -> memref<1x128xf32, #tpu.memory_space<vmem>>
    tpu.wait_dma2 semaphore(%arg5 : memref<!tpu.dma_semaphore, #tpu.memory_space<semaphore_mem>>) src(%81 : memref<1x128xf32, #tpu.memory_space<any>>) dst(%82 : memref<1x128xf32, #tpu.memory_space<vmem>>)
    %c0_i32_52 = arith.constant 0 : i32
    %c0_i32_53 = arith.constant 0 : i32
    %83 = tpu.memref_slice %arg2[%c0_i32_52, %c0_i32_53] : memref<32x128xf32, #tpu.memory_space<any>> -> memref<1x128xf32, #tpu.memory_space<any>>
    %c1_i32_54 = arith.constant 1 : i32
    %c0_i32_55 = arith.constant 0 : i32
    %84 = tpu.memref_slice %arg4[%c1_i32_54, %c0_i32_55] : memref<16x128xf32, #tpu.memory_space<vmem>> -> memref<1x128xf32, #tpu.memory_space<vmem>>
    tpu.wait_dma2 semaphore(%arg5 : memref<!tpu.dma_semaphore, #tpu.memory_space<semaphore_mem>>) src(%83 : memref<1x128xf32, #tpu.memory_space<any>>) dst(%84 : memref<1x128xf32, #tpu.memory_space<vmem>>)
    %c0_i32_56 = arith.constant 0 : i32
    %c0_i32_57 = arith.constant 0 : i32
    %85 = tpu.memref_slice %arg2[%c0_i32_56, %c0_i32_57] : memref<32x128xf32, #tpu.memory_space<any>> -> memref<1x128xf32, #tpu.memory_space<any>>
    %c2_i32_58 = arith.constant 2 : i32
    %c0_i32_59 = arith.constant 0 : i32
    %86 = tpu.memref_slice %arg4[%c2_i32_58, %c0_i32_59] : memref<16x128xf32, #tpu.memory_space<vmem>> -> memref<1x128xf32, #tpu.memory_space<vmem>>
    tpu.wait_dma2 semaphore(%arg5 : memref<!tpu.dma_semaphore, #tpu.memory_space<semaphore_mem>>) src(%85 : memref<1x128xf32, #tpu.memory_space<any>>) dst(%86 : memref<1x128xf32, #tpu.memory_space<vmem>>)
    %c0_i32_60 = arith.constant 0 : i32
    %c0_i32_61 = arith.constant 0 : i32
    %87 = tpu.memref_slice %arg2[%c0_i32_60, %c0_i32_61] : memref<32x128xf32, #tpu.memory_space<any>> -> memref<1x128xf32, #tpu.memory_space<any>>
    %c3_i32_62 = arith.constant 3 : i32
    %c0_i32_63 = arith.constant 0 : i32
    %88 = tpu.memref_slice %arg4[%c3_i32_62, %c0_i32_63] : memref<16x128xf32, #tpu.memory_space<vmem>> -> memref<1x128xf32, #tpu.memory_space<vmem>>
    tpu.wait_dma2 semaphore(%arg5 : memref<!tpu.dma_semaphore, #tpu.memory_space<semaphore_mem>>) src(%87 : memref<1x128xf32, #tpu.memory_space<any>>) dst(%88 : memref<1x128xf32, #tpu.memory_space<vmem>>)
    %c0_i32_64 = arith.constant 0 : i32
    %c0_i32_65 = arith.constant 0 : i32
    %89 = tpu.memref_slice %arg2[%c0_i32_64, %c0_i32_65] : memref<32x128xf32, #tpu.memory_space<any>> -> memref<1x128xf32, #tpu.memory_space<any>>
    %c4_i32_66 = arith.constant 4 : i32
    %c0_i32_67 = arith.constant 0 : i32
    %90 = tpu.memref_slice %arg4[%c4_i32_66, %c0_i32_67] : memref<16x128xf32, #tpu.memory_space<vmem>> -> memref<1x128xf32, #tpu.memory_space<vmem>>
    tpu.wait_dma2 semaphore(%arg5 : memref<!tpu.dma_semaphore, #tpu.memory_space<semaphore_mem>>) src(%89 : memref<1x128xf32, #tpu.memory_space<any>>) dst(%90 : memref<1x128xf32, #tpu.memory_space<vmem>>)
    %c0_i32_68 = arith.constant 0 : i32
    %c0_i32_69 = arith.constant 0 : i32
    %91 = tpu.memref_slice %arg2[%c0_i32_68, %c0_i32_69] : memref<32x128xf32, #tpu.memory_space<any>> -> memref<1x128xf32, #tpu.memory_space<any>>
    %c5_i32_70 = arith.constant 5 : i32
    %c0_i32_71 = arith.constant 0 : i32
    %92 = tpu.memref_slice %arg4[%c5_i32_70, %c0_i32_71] : memref<16x128xf32, #tpu.memory_space<vmem>> -> memref<1x128xf32, #tpu.memory_space<vmem>>
    tpu.wait_dma2 semaphore(%arg5 : memref<!tpu.dma_semaphore, #tpu.memory_space<semaphore_mem>>) src(%91 : memref<1x128xf32, #tpu.memory_space<any>>) dst(%92 : memref<1x128xf32, #tpu.memory_space<vmem>>)
    %c0_i32_72 = arith.constant 0 : i32
    %c0_i32_73 = arith.constant 0 : i32
    %93 = tpu.memref_slice %arg2[%c0_i32_72, %c0_i32_73] : memref<32x128xf32, #tpu.memory_space<any>> -> memref<1x128xf32, #tpu.memory_space<any>>
    %c6_i32_74 = arith.constant 6 : i32
    %c0_i32_75 = arith.constant 0 : i32
    %94 = tpu.memref_slice %arg4[%c6_i32_74, %c0_i32_75] : memref<16x128xf32, #tpu.memory_space<vmem>> -> memref<1x128xf32, #tpu.memory_space<vmem>>
    tpu.wait_dma2 semaphore(%arg5 : memref<!tpu.dma_semaphore, #tpu.memory_space<semaphore_mem>>) src(%93 : memref<1x128xf32, #tpu.memory_space<any>>) dst(%94 : memref<1x128xf32, #tpu.memory_space<vmem>>)
    %c0_i32_76 = arith.constant 0 : i32
    %c0_i32_77 = arith.constant 0 : i32
    %95 = tpu.memref_slice %arg2[%c0_i32_76, %c0_i32_77] : memref<32x128xf32, #tpu.memory_space<any>> -> memref<1x128xf32, #tpu.memory_space<any>>
    %c7_i32_78 = arith.constant 7 : i32
    %c0_i32_79 = arith.constant 0 : i32
    %96 = tpu.memref_slice %arg4[%c7_i32_78, %c0_i32_79] : memref<16x128xf32, #tpu.memory_space<vmem>> -> memref<1x128xf32, #tpu.memory_space<vmem>>
    tpu.wait_dma2 semaphore(%arg5 : memref<!tpu.dma_semaphore, #tpu.memory_space<semaphore_mem>>) src(%95 : memref<1x128xf32, #tpu.memory_space<any>>) dst(%96 : memref<1x128xf32, #tpu.memory_space<vmem>>)
    %c0_i32_80 = arith.constant 0 : i32
    %c0_i32_81 = arith.constant 0 : i32
    %97 = tpu.memref_slice %arg2[%c0_i32_80, %c0_i32_81] : memref<32x128xf32, #tpu.memory_space<any>> -> memref<1x128xf32, #tpu.memory_space<any>>
    %c8_i32_82 = arith.constant 8 : i32
    %c0_i32_83 = arith.constant 0 : i32
    %98 = tpu.memref_slice %arg4[%c8_i32_82, %c0_i32_83] : memref<16x128xf32, #tpu.memory_space<vmem>> -> memref<1x128xf32, #tpu.memory_space<vmem>>
    tpu.wait_dma2 semaphore(%arg5 : memref<!tpu.dma_semaphore, #tpu.memory_space<semaphore_mem>>) src(%97 : memref<1x128xf32, #tpu.memory_space<any>>) dst(%98 : memref<1x128xf32, #tpu.memory_space<vmem>>)
    %c0_i32_84 = arith.constant 0 : i32
    %c0_i32_85 = arith.constant 0 : i32
    %99 = tpu.memref_slice %arg2[%c0_i32_84, %c0_i32_85] : memref<32x128xf32, #tpu.memory_space<any>> -> memref<1x128xf32, #tpu.memory_space<any>>
    %c9_i32_86 = arith.constant 9 : i32
    %c0_i32_87 = arith.constant 0 : i32
    %100 = tpu.memref_slice %arg4[%c9_i32_86, %c0_i32_87] : memref<16x128xf32, #tpu.memory_space<vmem>> -> memref<1x128xf32, #tpu.memory_space<vmem>>
    tpu.wait_dma2 semaphore(%arg5 : memref<!tpu.dma_semaphore, #tpu.memory_space<semaphore_mem>>) src(%99 : memref<1x128xf32, #tpu.memory_space<any>>) dst(%100 : memref<1x128xf32, #tpu.memory_space<vmem>>)
    %c0_i32_88 = arith.constant 0 : i32
    %c0_i32_89 = arith.constant 0 : i32
    %101 = tpu.memref_slice %arg2[%c0_i32_88, %c0_i32_89] : memref<32x128xf32, #tpu.memory_space<any>> -> memref<1x128xf32, #tpu.memory_space<any>>
    %c10_i32_90 = arith.constant 10 : i32
    %c0_i32_91 = arith.constant 0 : i32
    %102 = tpu.memref_slice %arg4[%c10_i32_90, %c0_i32_91] : memref<16x128xf32, #tpu.memory_space<vmem>> -> memref<1x128xf32, #tpu.memory_space<vmem>>
    tpu.wait_dma2 semaphore(%arg5 : memref<!tpu.dma_semaphore, #tpu.memory_space<semaphore_mem>>) src(%101 : memref<1x128xf32, #tpu.memory_space<any>>) dst(%102 : memref<1x128xf32, #tpu.memory_space<vmem>>)
    %c0_i32_92 = arith.constant 0 : i32
    %c0_i32_93 = arith.constant 0 : i32
    %103 = tpu.memref_slice %arg2[%c0_i32_92, %c0_i32_93] : memref<32x128xf32, #tpu.memory_space<any>> -> memref<1x128xf32, #tpu.memory_space<any>>
    %c11_i32_94 = arith.constant 11 : i32
    %c0_i32_95 = arith.constant 0 : i32
    %104 = tpu.memref_slice %arg4[%c11_i32_94, %c0_i32_95] : memref<16x128xf32, #tpu.memory_space<vmem>> -> memref<1x128xf32, #tpu.memory_space<vmem>>
    tpu.wait_dma2 semaphore(%arg5 : memref<!tpu.dma_semaphore, #tpu.memory_space<semaphore_mem>>) src(%103 : memref<1x128xf32, #tpu.memory_space<any>>) dst(%104 : memref<1x128xf32, #tpu.memory_space<vmem>>)
    %c0_i32_96 = arith.constant 0 : i32
    %c0_i32_97 = arith.constant 0 : i32
    %105 = tpu.memref_slice %arg2[%c0_i32_96, %c0_i32_97] : memref<32x128xf32, #tpu.memory_space<any>> -> memref<1x128xf32, #tpu.memory_space<any>>
    %c12_i32_98 = arith.constant 12 : i32
    %c0_i32_99 = arith.constant 0 : i32
    %106 = tpu.memref_slice %arg4[%c12_i32_98, %c0_i32_99] : memref<16x128xf32, #tpu.memory_space<vmem>> -> memref<1x128xf32, #tpu.memory_space<vmem>>
    tpu.wait_dma2 semaphore(%arg5 : memref<!tpu.dma_semaphore, #tpu.memory_space<semaphore_mem>>) src(%105 : memref<1x128xf32, #tpu.memory_space<any>>) dst(%106 : memref<1x128xf32, #tpu.memory_space<vmem>>)
    %c0_i32_100 = arith.constant 0 : i32
    %c0_i32_101 = arith.constant 0 : i32
    %107 = tpu.memref_slice %arg2[%c0_i32_100, %c0_i32_101] : memref<32x128xf32, #tpu.memory_space<any>> -> memref<1x128xf32, #tpu.memory_space<any>>
    %c13_i32_102 = arith.constant 13 : i32
    %c0_i32_103 = arith.constant 0 : i32
    %108 = tpu.memref_slice %arg4[%c13_i32_102, %c0_i32_103] : memref<16x128xf32, #tpu.memory_space<vmem>> -> memref<1x128xf32, #tpu.memory_space<vmem>>
    tpu.wait_dma2 semaphore(%arg5 : memref<!tpu.dma_semaphore, #tpu.memory_space<semaphore_mem>>) src(%107 : memref<1x128xf32, #tpu.memory_space<any>>) dst(%108 : memref<1x128xf32, #tpu.memory_space<vmem>>)
    %c0_i32_104 = arith.constant 0 : i32
    %c0_i32_105 = arith.constant 0 : i32
    %109 = tpu.memref_slice %arg2[%c0_i32_104, %c0_i32_105] : memref<32x128xf32, #tpu.memory_space<any>> -> memref<1x128xf32, #tpu.memory_space<any>>
    %c14_i32_106 = arith.constant 14 : i32
    %c0_i32_107 = arith.constant 0 : i32
    %110 = tpu.memref_slice %arg4[%c14_i32_106, %c0_i32_107] : memref<16x128xf32, #tpu.memory_space<vmem>> -> memref<1x128xf32, #tpu.memory_space<vmem>>
    tpu.wait_dma2 semaphore(%arg5 : memref<!tpu.dma_semaphore, #tpu.memory_space<semaphore_mem>>) src(%109 : memref<1x128xf32, #tpu.memory_space<any>>) dst(%110 : memref<1x128xf32, #tpu.memory_space<vmem>>)
    %c0_i32_108 = arith.constant 0 : i32
    %c0_i32_109 = arith.constant 0 : i32
    %111 = tpu.memref_slice %arg2[%c0_i32_108, %c0_i32_109] : memref<32x128xf32, #tpu.memory_space<any>> -> memref<1x128xf32, #tpu.memory_space<any>>
    %c15_i32_110 = arith.constant 15 : i32
    %c0_i32_111 = arith.constant 0 : i32
    %112 = tpu.memref_slice %arg4[%c15_i32_110, %c0_i32_111] : memref<16x128xf32, #tpu.memory_space<vmem>> -> memref<1x128xf32, #tpu.memory_space<vmem>>
    tpu.wait_dma2 semaphore(%arg5 : memref<!tpu.dma_semaphore, #tpu.memory_space<semaphore_mem>>) src(%111 : memref<1x128xf32, #tpu.memory_space<any>>) dst(%112 : memref<1x128xf32, #tpu.memory_space<vmem>>)
    %c0 = arith.constant 0 : index
    %c0_112 = arith.constant 0 : index
    %113 = vector.load %arg4[%c0, %c0_112] : memref<16x128xf32, #tpu.memory_space<vmem>>, vector<16x128xf32>
    %cst = arith.constant 11.3137083 : f32
    %114 = vector.broadcast %cst : f32 to vector<16x128xf32>
    %115 = arith.mulf %113, %114 : vector<16x128xf32>
    %c0_113 = arith.constant 0 : index
    %c0_114 = arith.constant 0 : index
    %116 = vector.load %arg3[%c0_113, %c0_114] : memref<16x128xf32, #tpu.memory_space<vmem>>, vector<16x128xf32>
    tpu.vector_store %arg3[%c0_113, %c0_114], %115 {strides = array<i32>} : memref<16x128xf32, #tpu.memory_space<vmem>>, vector<16x128xf32>,
    return
  }
  func.func @transform_1(%arg0: i32, %arg1: memref<16xi32, #tpu.memory_space<smem>>) -> (i32, i32) {
    %c0_i32 = arith.constant 0 : i32
    %c0_i32_0 = arith.constant 0 : i32
    return %arg0, %c0_i32 : i32, i32
  }
}

</mosaic_0001>

<llo_original>
// kernel: input_embeddings.1
$region0: #{input_embeddings.1}
  #allocation0 [shape = 'u32[]', space=smem, size = 0x4, offset = 0x4, fixed_abs, tag = 'smem constant byte address 0x4 - core index']
  #allocation1 [shape = 'u32[144,128]{1,0:T(1,128)}', space=vmem, size = 0x12000, scoped, tag = 'internal scratch']
  #allocation2 [shape = 'f32[16,128]{1,0:T(8,128)}', space=vmem, size = 0x2000, scoped, tag = 'scratch operand']
  #allocation3 [shape = 's32[1]{0}', space=sflag, size = 0x4, scoped, tag = 'scratch operand']
  #allocation4 [shape = 's32[1]{0}', space=sflag, size = 0x4, scoped, tag = 'scoped memory for input_embeddings.1']
  #allocation5 [shape = 'u8[512]{0}', space=smem, size = 0x200, scoped, tag = 'prefetched SMEM operand 0']
  #allocation8 [shape = 's32[]', space=sflag, size = 0x4, offset = 0, fixed_abs, tag = 'sflag constant byte address 0x0 - dummy sync flag']
  #allocation9 [shape = 's32[]', space=sflag, size = 0x4, offset = 0, fixed_abs, tag = 'sflag constant byte address 0x0 - dummy sync flag']
  #allocation10 [shape = 'u32[]', space=smem, size = 0x4, offset = 0x44, fixed_abs, tag = 'smem constant byte address 0x44 - assertion arg 0']
  #allocation11 [shape = 'u32[]', space=smem, size = 0x4, offset = 0x48, fixed_abs, tag = 'smem constant byte address 0x48 - assertion arg 1']
  #allocation12 [shape = 's32[]', space=sflag, size = 0x4, offset = 0, fixed_abs, tag = 'sflag constant byte address 0x0 - dummy sync flag']
  #allocation13 [shape = 's32[]', space=sflag, size = 0x4, offset = 0, fixed_abs, tag = 'sflag constant byte address 0x0 - dummy sync flag']
  #allocation14 [shape = 's32[]', space=sflag, size = 0x4, offset = 0, fixed_abs, tag = 'sflag constant byte address 0x0 - dummy sync flag']
  #allocation15 [shape = 's32[]', space=sflag, size = 0x4, offset = 0, fixed_abs, tag = 'sflag constant byte address 0x0 - dummy sync flag']
  #allocation16 [shape = 's32[]', space=sflag, size = 0x4, offset = 0, fixed_abs, tag = 'sflag constant byte address 0x0 - dummy sync flag']
  #allocation17 [shape = 's32[]', space=sflag, size = 0x4, offset = 0, fixed_abs, tag = 'sflag constant byte address 0x0 - dummy sync flag']
  #allocation18 [shape = 's32[]', space=sflag, size = 0x4, offset = 0, fixed_abs, tag = 'sflag constant byte address 0x0 - dummy sync flag']
  #allocation19 [shape = 's32[]', space=sflag, size = 0x4, offset = 0, fixed_abs, tag = 'sflag constant byte address 0x0 - dummy sync flag']
  #allocation20 [shape = 's32[]', space=sflag, size = 0x4, offset = 0, fixed_abs, tag = 'sflag constant byte address 0x0 - dummy sync flag']
  #allocation21 [shape = 's32[]', space=sflag, size = 0x4, offset = 0, fixed_abs, tag = 'sflag constant byte address 0x0 - dummy sync flag']
  #allocation22 [shape = 's32[]', space=sflag, size = 0x4, offset = 0, fixed_abs, tag = 'sflag constant byte address 0x0 - dummy sync flag']
  #allocation23 [shape = 's32[]', space=sflag, size = 0x4, offset = 0, fixed_abs, tag = 'sflag constant byte address 0x0 - dummy sync flag']
  #allocation24 [shape = 's32[]', space=sflag, size = 0x4, offset = 0, fixed_abs, tag = 'sflag constant byte address 0x0 - dummy sync flag']
  #allocation25 [shape = 's32[]', space=sflag, size = 0x4, offset = 0, fixed_abs, tag = 'sflag constant byte address 0x0 - dummy sync flag']
  #allocation26 [shape = 's32[]', space=sflag, size = 0x4, offset = 0, fixed_abs, tag = 'sflag constant byte address 0x0 - dummy sync flag']
  #allocation27 [shape = 's32[]', space=sflag, size = 0x4, offset = 0, fixed_abs, tag = 'sflag constant byte address 0x0 - dummy sync flag']
  #allocation28 [shape = 's32[]', space=sflag, size = 0x4, offset = 0, fixed_abs, tag = 'sflag constant byte address 0x0 - dummy sync flag']
  #allocation29 [shape = 's32[]', space=sflag, size = 0x4, offset = 0, fixed_abs, tag = 'sflag constant byte address 0x0 - dummy sync flag']
  #allocation30 [shape = 's32[]', space=sflag, size = 0x4, offset = 0, fixed_abs, tag = 'sflag constant byte address 0x0 - dummy sync flag']
  #allocation31 [shape = 's32[]', space=sflag, size = 0x4, offset = 0, fixed_abs, tag = 'sflag constant byte address 0x0 - dummy sync flag']
  #allocation32 [shape = 's32[]', space=sflag, size = 0x4, offset = 0, fixed_abs, tag = 'sflag constant byte address 0x0 - dummy sync flag']
  #allocation33 [shape = 's32[]', space=sflag, size = 0x4, offset = 0, fixed_abs, tag = 'sflag constant byte address 0x0 - dummy sync flag']
  #allocation34 [shape = 's32[]', space=sflag, size = 0x4, offset = 0, fixed_abs, tag = 'sflag constant byte address 0x0 - dummy sync flag']
  #allocation35 [shape = 's32[]', space=sflag, size = 0x4, offset = 0, fixed_abs, tag = 'sflag constant byte address 0x0 - dummy sync flag']
  #allocation36 [shape = 's32[]', space=sflag, size = 0x4, offset = 0, fixed_abs, tag = 'sflag constant byte address 0x0 - dummy sync flag']
  #allocation37 [shape = 's32[]', space=sflag, size = 0x4, offset = 0, fixed_abs, tag = 'sflag constant byte address 0x0 - dummy sync flag']
  #allocation38 [shape = 's32[]', space=sflag, size = 0x4, offset = 0, fixed_abs, tag = 'sflag constant byte address 0x0 - dummy sync flag']
  #allocation39 [shape = 's32[]', space=sflag, size = 0x4, offset = 0, fixed_abs, tag = 'sflag constant byte address 0x0 - dummy sync flag']
  #allocation40 [shape = 's32[]', space=sflag, size = 0x4, offset = 0, fixed_abs, tag = 'sflag constant byte address 0x0 - dummy sync flag']
  #allocation41 [shape = 's32[]', space=sflag, size = 0x4, offset = 0, fixed_abs, tag = 'sflag constant byte address 0x0 - dummy sync flag']
  %s0 = inlined_call_operand.vmem [shape: s32[16], index: 0, kind: input, shape index: {}]
  %s1 = inlined_call_operand.hbm [shape: f32[32,128], index: 1, kind: input, shape index: {}]
  %s2 = inlined_call_operand.hbm [shape: f32[16,128], index: 2, kind: output, shape index: {}]
  %s3 = sld [smem:[#allocation0]]
  $region74: #{input_embeddings.1} parent=0
    _
  %s5 = ssub.s32 1, %s3
  %s6 = scalar_select 0, %s5, %s3
  %s7 = sshll.u32 %s0, 4
  %s8 = int_to_ptr.vmem [resolvable:$true] %s7
  %10 = dma.vmem_to_smem %s8, 16, [#allocation5], [#allocation4]
  %11 = dma.done [#allocation4], 16
  %12 = sfence
  $region1: #{input_embeddings.1} parent=0
    #allocation6 [shape = 'u8[8192]{0}', space=vmem, size = 0x2000, scoped, tag = 'output window, operand 0, single buffered']
    #allocation7 [shape = 's32[1]{0}', space=sflag, size = 0x4, scoped, tag = 'scoped memory for input_embeddings.1']
    %13 = vsyncpa [#allocation7], 0
    %s14 = smul.u32 0, 16
    %s15 = sld [smem:[#allocation5 + %s14]]
    %s16 = smul.addr %s15, 16
    %s17 = scalar_lea.hbm %s1, %s16
    // Predicated region
    $region2: #{input_embeddings.1} parent=1 // pred_check
      _
    $region3: #{input_embeddings.1} parent=1 // pred_check_branch
      %19 = sbr.rel target = $region5
    $region4: #{input_embeddings.1} parent=1 // pred_region
      %20 = sst [smem:[#allocation10]] [#allocation9]
      %21 = sst [smem:[#allocation11]] [#allocation8]
    $region5: #{input_embeddings.1} parent=1 // pred_fallthru
      _
    %23 = shalt.err (0)
    %s25 = sshll.u32 [#allocation2], 4
    %s26 = int_to_ptr.vmem [resolvable:$true] %s25
    %28 = dma.hbm_to_vmem [thread:$0]  %s17, 16, %s26, [#allocation3]
    %s29 = sadd.s32 %s14, 1
    %s30 = sld [smem:[#allocation5 + %s29]]
    %s31 = smul.addr %s30, 16
    %s32 = scalar_lea.hbm %s1, %s31
    %s33 = scalar_lea.vmem [#allocation2], 1
    // Predicated region
    $region6: #{input_embeddings.1} parent=1 // pred_check
      _
    $region7: #{input_embeddings.1} parent=1 // pred_check_branch
      %35 = sbr.rel target = $region9
    $region8: #{input_embeddings.1} parent=1 // pred_region
      %36 = sst [smem:[#allocation10]] [#allocation13]
      %37 = sst [smem:[#allocation11]] [#allocation12]
    $region9: #{input_embeddings.1} parent=1 // pred_fallthru
      _
    %39 = shalt.err (0)
    %s41 = sshll.u32 %s33, 4
    %s42 = int_to_ptr.vmem [resolvable:$true] %s41
    %44 = dma.hbm_to_vmem [thread:$0]  %s32, 16, %s42, [#allocation3]
    %s45 = sadd.s32 %s14, 2
    %s46 = sld [smem:[#allocation5 + %s45]]
    %s47 = smul.addr %s46, 16
    %s48 = scalar_lea.hbm %s1, %s47
    %s49 = scalar_lea.vmem [#allocation2], 2
    // Predicated region
    $region10: #{input_embeddings.1} parent=1 // pred_check
      _
    $region11: #{input_embeddings.1} parent=1 // pred_check_branch
      %51 = sbr.rel target = $region13
    $region12: #{input_embeddings.1} parent=1 // pred_region
      %52 = sst [smem:[#allocation10]] [#allocation15]
      %53 = sst [smem:[#allocation11]] [#allocation14]
    $region13: #{input_embeddings.1} parent=1 // pred_fallthru
      _
    %55 = shalt.err (0)
    %s57 = sshll.u32 %s49, 4
    %s58 = int_to_ptr.vmem [resolvable:$true] %s57
    %60 = dma.hbm_to_vmem [thread:$0]  %s48, 16, %s58, [#allocation3]
    %s61 = sadd.s32 %s14, 3
    %s62 = sld [smem:[#allocation5 + %s61]]
    %s63 = smul.addr %s62, 16
    %s64 = scalar_lea.hbm %s1, %s63
    %s65 = scalar_lea.vmem [#allocation2], 3
    // Predicated region
    $region14: #{input_embeddings.1} parent=1 // pred_check
      _
    $region15: #{input_embeddings.1} parent=1 // pred_check_branch
      %67 = sbr.rel target = $region17
    $region16: #{input_embeddings.1} parent=1 // pred_region
      %68 = sst [smem:[#allocation10]] [#allocation17]
      %69 = sst [smem:[#allocation11]] [#allocation16]
    $region17: #{input_embeddings.1} parent=1 // pred_fallthru
      _
    %71 = shalt.err (0)
    %s73 = sshll.u32 %s65, 4
    %s74 = int_to_ptr.vmem [resolvable:$true] %s73
    %76 = dma.hbm_to_vmem [thread:$0]  %s64, 16, %s74, [#allocation3]
    %s77 = sadd.s32 %s14, 4
    %s78 = sld [smem:[#allocation5 + %s77]]
    %s79 = smul.addr %s78, 16
    %s80 = scalar_lea.hbm %s1, %s79
    %s81 = scalar_lea.vmem [#allocation2], 4
    // Predicated region
    $region18: #{input_embeddings.1} parent=1 // pred_check
      _
    $region19: #{input_embeddings.1} parent=1 // pred_check_branch
      %83 = sbr.rel target = $region21
    $region20: #{input_embeddings.1} parent=1 // pred_region
      %84 = sst [smem:[#allocation10]] [#allocation19]
      %85 = sst [smem:[#allocation11]] [#allocation18]
    $region21: #{input_embeddings.1} parent=1 // pred_fallthru
      _
    %87 = shalt.err (0)
    %s89 = sshll.u32 %s81, 4
    %s90 = int_to_ptr.vmem [resolvable:$true] %s89
    %92 = dma.hbm_to_vmem [thread:$0]  %s80, 16, %s90, [#allocation3]
    %s93 = sadd.s32 %s14, 5
    %s94 = sld [smem:[#allocation5 + %s93]]
    %s95 = smul.addr %s94, 16
    %s96 = scalar_lea.hbm %s1, %s95
    %s97 = scalar_lea.vmem [#allocation2], 5
    // Predicated region
    $region22: #{input_embeddings.1} parent=1 // pred_check
      _
    $region23: #{input_embeddings.1} parent=1 // pred_check_branch
      %99 = sbr.rel target = $region25
    $region24: #{input_embeddings.1} parent=1 // pred_region
      %100 = sst [smem:[#allocation10]] [#allocation21]
      %101 = sst [smem:[#allocation11]] [#allocation20]
    $region25: #{input_embeddings.1} parent=1 // pred_fallthru
      _
    %103 = shalt.err (0)
    %s105 = sshll.u32 %s97, 4
    %s106 = int_to_ptr.vmem [resolvable:$true] %s105
    %108 = dma.hbm_to_vmem [thread:$0]  %s96, 16, %s106, [#allocation3]
    %s109 = sadd.s32 %s14, 6
    %s110 = sld [smem:[#allocation5 + %s109]]
    %s111 = smul.addr %s110, 16
    %s112 = scalar_lea.hbm %s1, %s111
    %s113 = scalar_lea.vmem [#allocation2], 6
    // Predicated region
    $region26: #{input_embeddings.1} parent=1 // pred_check
      _
    $region27: #{input_embeddings.1} parent=1 // pred_check_branch
      %115 = sbr.rel target = $region29
    $region28: #{input_embeddings.1} parent=1 // pred_region
      %116 = sst [smem:[#allocation10]] [#allocation23]
      %117 = sst [smem:[#allocation11]] [#allocation22]
    $region29: #{input_embeddings.1} parent=1 // pred_fallthru
      _
    %119 = shalt.err (0)
    %s121 = sshll.u32 %s113, 4
    %s122 = int_to_ptr.vmem [resolvable:$true] %s121
    %124 = dma.hbm_to_vmem [thread:$0]  %s112, 16, %s122, [#allocation3]
    %s125 = sadd.s32 %s14, 7
    %s126 = sld [smem:[#allocation5 + %s125]]
    %s127 = smul.addr %s126, 16
    %s128 = scalar_lea.hbm %s1, %s127
    %s129 = scalar_lea.vmem [#allocation2], 7
    // Predicated region
    $region30: #{input_embeddings.1} parent=1 // pred_check
      _
    $region31: #{input_embeddings.1} parent=1 // pred_check_branch
      %131 = sbr.rel target = $region33
    $region32: #{input_embeddings.1} parent=1 // pred_region
      %132 = sst [smem:[#allocation10]] [#allocation25]
      %133 = sst [smem:[#allocation11]] [#allocation24]
    $region33: #{input_embeddings.1} parent=1 // pred_fallthru
      _
    %135 = shalt.err (0)
    %s137 = sshll.u32 %s129, 4
    %s138 = int_to_ptr.vmem [resolvable:$true] %s137
    %140 = dma.hbm_to_vmem [thread:$0]  %s128, 16, %s138, [#allocation3]
    %s141 = sadd.s32 %s14, 8
    %s142 = sld [smem:[#allocation5 + %s141]]
    %s143 = smul.addr %s142, 16
    %s144 = scalar_lea.hbm %s1, %s143
    %s145 = scalar_lea.vmem [#allocation2], 8
    // Predicated region
    $region34: #{input_embeddings.1} parent=1 // pred_check
      _
    $region35: #{input_embeddings.1} parent=1 // pred_check_branch
      %147 = sbr.rel target = $region37
    $region36: #{input_embeddings.1} parent=1 // pred_region
      %148 = sst [smem:[#allocation10]] [#allocation27]
      %149 = sst [smem:[#allocation11]] [#allocation26]
    $region37: #{input_embeddings.1} parent=1 // pred_fallthru
      _
    %151 = shalt.err (0)
    %s153 = sshll.u32 %s145, 4
    %s154 = int_to_ptr.vmem [resolvable:$true] %s153
    %156 = dma.hbm_to_vmem [thread:$0]  %s144, 16, %s154, [#allocation3]
    %s157 = sadd.s32 %s14, 9
    %s158 = sld [smem:[#allocation5 + %s157]]
    %s159 = smul.addr %s158, 16
    %s160 = scalar_lea.hbm %s1, %s159
    %s161 = scalar_lea.vmem [#allocation2], 9
    // Predicated region
    $region38: #{input_embeddings.1} parent=1 // pred_check
      _
    $region39: #{input_embeddings.1} parent=1 // pred_check_branch
      %163 = sbr.rel target = $region41
    $region40: #{input_embeddings.1} parent=1 // pred_region
      %164 = sst [smem:[#allocation10]] [#allocation29]
      %165 = sst [smem:[#allocation11]] [#allocation28]
    $region41: #{input_embeddings.1} parent=1 // pred_fallthru
      _
    %167 = shalt.err (0)
    %s169 = sshll.u32 %s161, 4
    %s170 = int_to_ptr.vmem [resolvable:$true] %s169
    %172 = dma.hbm_to_vmem [thread:$0]  %s160, 16, %s170, [#allocation3]
    %s173 = sadd.s32 %s14, 10
    %s174 = sld [smem:[#allocation5 + %s173]]
    %s175 = smul.addr %s174, 16
    %s176 = scalar_lea.hbm %s1, %s175
    %s177 = scalar_lea.vmem [#allocation2], 10
    // Predicated region
    $region42: #{input_embeddings.1} parent=1 // pred_check
      _
    $region43: #{input_embeddings.1} parent=1 // pred_check_branch
      %179 = sbr.rel target = $region45
    $region44: #{input_embeddings.1} parent=1 // pred_region
      %180 = sst [smem:[#allocation10]] [#allocation31]
      %181 = sst [smem:[#allocation11]] [#allocation30]
    $region45: #{input_embeddings.1} parent=1 // pred_fallthru
      _
    %183 = shalt.err (0)
    %s185 = sshll.u32 %s177, 4
    %s186 = int_to_ptr.vmem [resolvable:$true] %s185
    %188 = dma.hbm_to_vmem [thread:$0]  %s176, 16, %s186, [#allocation3]
    %s189 = sadd.s32 %s14, 11
    %s190 = sld [smem:[#allocation5 + %s189]]
    %s191 = smul.addr %s190, 16
    %s192 = scalar_lea.hbm %s1, %s191
    %s193 = scalar_lea.vmem [#allocation2], 11
    // Predicated region
    $region46: #{input_embeddings.1} parent=1 // pred_check
      _
    $region47: #{input_embeddings.1} parent=1 // pred_check_branch
      %195 = sbr.rel target = $region49
    $region48: #{input_embeddings.1} parent=1 // pred_region
      %196 = sst [smem:[#allocation10]] [#allocation33]
      %197 = sst [smem:[#allocation11]] [#allocation32]
    $region49: #{input_embeddings.1} parent=1 // pred_fallthru
      _
    %199 = shalt.err (0)
    %s201 = sshll.u32 %s193, 4
    %s202 = int_to_ptr.vmem [resolvable:$true] %s201
    %204 = dma.hbm_to_vmem [thread:$0]  %s192, 16, %s202, [#allocation3]
    %s205 = sadd.s32 %s14, 12
    %s206 = sld [smem:[#allocation5 + %s205]]
    %s207 = smul.addr %s206, 16
    %s208 = scalar_lea.hbm %s1, %s207
    %s209 = scalar_lea.vmem [#allocation2], 12
    // Predicated region
    $region50: #{input_embeddings.1} parent=1 // pred_check
      _
    $region51: #{input_embeddings.1} parent=1 // pred_check_branch
      %211 = sbr.rel target = $region53
    $region52: #{input_embeddings.1} parent=1 // pred_region
      %212 = sst [smem:[#allocation10]] [#allocation35]
      %213 = sst [smem:[#allocation11]] [#allocation34]
    $region53: #{input_embeddings.1} parent=1 // pred_fallthru
      _
    %215 = shalt.err (0)
    %s217 = sshll.u32 %s209, 4
    %s218 = int_to_ptr.vmem [resolvable:$true] %s217
    %220 = dma.hbm_to_vmem [thread:$0]  %s208, 16, %s218, [#allocation3]
    %s221 = sadd.s32 %s14, 13
    %s222 = sld [smem:[#allocation5 + %s221]]
    %s223 = smul.addr %s222, 16
    %s224 = scalar_lea.hbm %s1, %s223
    %s225 = scalar_lea.vmem [#allocation2], 13
    // Predicated region
    $region54: #{input_embeddings.1} parent=1 // pred_check
      _
    $region55: #{input_embeddings.1} parent=1 // pred_check_branch
      %227 = sbr.rel target = $region57
    $region56: #{input_embeddings.1} parent=1 // pred_region
      %228 = sst [smem:[#allocation10]] [#allocation37]
      %229 = sst [smem:[#allocation11]] [#allocation36]
    $region57: #{input_embeddings.1} parent=1 // pred_fallthru
      _
    %231 = shalt.err (0)
    %s233 = sshll.u32 %s225, 4
    %s234 = int_to_ptr.vmem [resolvable:$true] %s233
    %236 = dma.hbm_to_vmem [thread:$0]  %s224, 16, %s234, [#allocation3]
    %s237 = sadd.s32 %s14, 14
    %s238 = sld [smem:[#allocation5 + %s237]]
    %s239 = smul.addr %s238, 16
    %s240 = scalar_lea.hbm %s1, %s239
    %s241 = scalar_lea.vmem [#allocation2], 14
    // Predicated region
    $region58: #{input_embeddings.1} parent=1 // pred_check
      _
    $region59: #{input_embeddings.1} parent=1 // pred_check_branch
      %243 = sbr.rel target = $region61
    $region60: #{input_embeddings.1} parent=1 // pred_region
      %244 = sst [smem:[#allocation10]] [#allocation39]
      %245 = sst [smem:[#allocation11]] [#allocation38]
    $region61: #{input_embeddings.1} parent=1 // pred_fallthru
      _
    %247 = shalt.err (0)
    %s249 = sshll.u32 %s241, 4
    %s250 = int_to_ptr.vmem [resolvable:$true] %s249
    %252 = dma.hbm_to_vmem [thread:$0]  %s240, 16, %s250, [#allocation3]
    %s253 = sadd.s32 %s14, 15
    %s254 = sld [smem:[#allocation5 + %s253]]
    %s255 = smul.addr %s254, 16
    %s256 = scalar_lea.hbm %s1, %s255
    %s257 = scalar_lea.vmem [#allocation2], 15
    // Predicated region
    $region62: #{input_embeddings.1} parent=1 // pred_check
      _
    $region63: #{input_embeddings.1} parent=1 // pred_check_branch
      %259 = sbr.rel target = $region65
    $region64: #{input_embeddings.1} parent=1 // pred_region
      %260 = sst [smem:[#allocation10]] [#allocation41]
      %261 = sst [smem:[#allocation11]] [#allocation40]
    $region65: #{input_embeddings.1} parent=1 // pred_fallthru
      _
    %263 = shalt.err (0)
    %s265 = sshll.u32 %s257, 4
    %s266 = int_to_ptr.vmem [resolvable:$true] %s265
    %268 = dma.hbm_to_vmem [thread:$0]  %s256, 16, %s266, [#allocation3]
    %s269 = smul.u32 1, 1
    %s270 = sshll.u32 %s269, 4
    %271 = dma.done [#allocation3], %s270
    %s272 = sshll.u32 %s269, 4
    %273 = dma.done [#allocation3], %s272
    %s274 = sshll.u32 %s269, 4
    %275 = dma.done [#allocation3], %s274
    %s276 = sshll.u32 %s269, 4
    %277 = dma.done [#allocation3], %s276
    %s278 = sshll.u32 %s269, 4
    %279 = dma.done [#allocation3], %s278
    %s280 = sshll.u32 %s269, 4
    %281 = dma.done [#allocation3], %s280
    %s282 = sshll.u32 %s269, 4
    %283 = dma.done [#allocation3], %s282
    %s284 = sshll.u32 %s269, 4
    %285 = dma.done [#allocation3], %s284
    %s286 = sshll.u32 %s269, 4
    %287 = dma.done [#allocation3], %s286
    %s288 = sshll.u32 %s269, 4
    %289 = dma.done [#allocation3], %s288
    %s290 = sshll.u32 %s269, 4
    %291 = dma.done [#allocation3], %s290
    %s292 = sshll.u32 %s269, 4
    %293 = dma.done [#allocation3], %s292
    %s294 = sshll.u32 %s269, 4
    %295 = dma.done [#allocation3], %s294
    %s296 = sshll.u32 %s269, 4
    %297 = dma.done [#allocation3], %s296
    %s298 = sshll.u32 %s269, 4
    %299 = dma.done [#allocation3], %s298
    %s300 = sshll.u32 %s269, 4
    %301 = dma.done [#allocation3], %s300
    %v302 = vld [vmem:[#allocation2] sm:$0xff]
    %v303 = vld [vmem:[#allocation2 + $0x8] sm:$0xff]
    %v304 = vmul.f32 %v302, 11.313708
    %v305 = vmul.f32 %v303, 11.313708
    %306 = vst [vmem:[#allocation6] sm:$0xff] %v304
    %307 = vst [vmem:[#allocation6 + $0x8] sm:$0xff] %v305
    // Predicated region
    $region66: #{input_embeddings.1} parent=1 // pred_check
      _
    $region67: #{input_embeddings.1} parent=1 // pred_check_branch
      %309 = sbr.rel (0) target = $region69
    $region68: #{input_embeddings.1} parent=1 // pred_region
      %s311 = ssub.s32 256, 256
      %312 = vsyncadd [#allocation7], %s311
      %s313 = sshll.u32 [#allocation6], 4
      %s314 = int_to_ptr.vmem [resolvable:$true] %s313
      %319 = dma.vmem_to_hbm [thread:$0]  %s314, 256, %s2, [#allocation7], 128, 128, 8
    $region69: #{input_embeddings.1} parent=1 // pred_fallthru
      _
    // Predicated region
    $region70: #{input_embeddings.1} parent=1 // pred_check
      _
    $region71: #{input_embeddings.1} parent=1 // pred_check_branch
      %321 = sbr.rel (0) target = $region73
    $region72: #{input_embeddings.1} parent=1 // pred_region
      %322 = dma.done [#allocation7], 256
    $region73: #{input_embeddings.1} parent=1 // pred_fallthru
      _
    %323 = vsyncpa [#allocation7], 1
  %324 = vsyncmov [#allocation3]
  %s325 = vpop.sfrf %324
  %p326 = scmp.eq.s32.totalorder %s325, 0
  %p327 = pneg %p326
  %329 = shalt.err (%p327)

</llo_original>
